<compile_context>
chip_gen: v6e
topology: v6e:2x2x1
jax: 0.10.0
libtpu: 0.0.40
codegen_flags: <defaults>
</compile_context>

<pallas_src>
import jax
import jax.numpy as jnp
from jax import lax
from jax.experimental import pallas as pl
from jax.experimental.pallas import tpu as pltpu


def _cosine_kernel(src_ref, tgt_ref, inv_ref, out_ref):
    # src_ref: (1, TM, D), tgt_ref: (1, TN, D), inv_ref: (1, TM, 1), out: (1, TM, TN)
    # scores[i, j] = dot(src_i, tgt_j): contract last dims directly on the MXU
    # (no materialized transpose), accumulate in f32.
    scores = lax.dot_general(
        src_ref[0], tgt_ref[0],
        dimension_numbers=(((1,), (1,)), ((), ())),
        preferred_element_type=jnp.float32,
    )                                                   # (TM, TN)
    out_ref[0] = (scores * inv_ref[0]).astype(out_ref.dtype)


def _round_up(x, m):
    return ((x + m - 1) // m) * m


def _pick_tile(dim, preferred, align):
    """Return (tile, padded_dim): tile is align-aligned and divides padded_dim."""
    min_pad = _round_up(dim, align)
    if min_pad <= preferred:
        return min_pad, min_pad          # single tile after minimal padding
    # Prefer the largest align-multiple tile <= preferred that divides the
    # minimally padded dim (no wasted rows); otherwise pad up to the tile.
    t = (preferred // align) * align
    while t >= max(align, 128):
        if min_pad % t == 0:
            return t, min_pad
        t -= align
    tile = max(align, (preferred // align) * align)
    return tile, _round_up(dim, tile)


def _footprint_bytes(tm, tn, d, extra_tgt_bufs=0):
    """Double-buffered per-step VMEM footprint (f32, lane-padded estimate)."""
    d_l = _round_up(d, 128)
    src_t = tm * d_l * 4
    tgt_t = tn * d_l * 4
    inv_t = tm * 128 * 4
    out_t = tm * tn * 4
    return 2 * (src_t + tgt_t + inv_t + out_t) + extra_tgt_bufs * tgt_t


def _tgt_spec(tn, d, triple_buffer):
    idx = lambda b, i, j: (b, j, 0)
    if triple_buffer:
        try:
            return pl.BlockSpec((1, tn, d), idx, pipeline_mode=pl.Buffered(3))
        except Exception:  # older jax without pipeline_mode / Buffered
            pass
    return pl.BlockSpec((1, tn, d), idx)


def cosine(src, tgt, *, tile_m=512, tile_n=256, vmem_budget_bytes=48 << 20):
    """src: [B, M, D], tgt: [B, N, D] with N == M (as torch broadcasting requires)."""
    B, M, D = src.shape
    Bt, N, Dt = tgt.shape
    assert B == Bt and D == Dt
    assert M == N, "torch broadcasting of [B,M,1]*[B,N,1] requires M == N"

    # Module semantics: src.float(), tgt.float() before the matmul.
    # (bf16 MXU operands with f32 accumulation are ~3-4x faster if the caller's
    #  tolerance allows; kept f32 here to match the module exactly.)
    src_f = src.astype(jnp.float32)
    tgt_f = tgt.astype(jnp.float32)

    # Row-wise inverse denominator precomputed once as a tiny [B, M, 1] array:
    # removes a full extra tgt pass + in-kernel norm reduction + carried scratch.
    s_norm = jnp.linalg.norm(src_f, axis=-1, keepdims=True)     # [B, M, 1]
    t_norm = jnp.linalg.norm(tgt_f, axis=-1, keepdims=True)     # [B, N, 1], N == M
    inv_denom = 1.0 / (s_norm * t_norm + 1e-9)                  # [B, M, 1]

    # --- tile selection + padding (always lane-dense, always pipelined) -----
    tm, M_pad = _pick_tile(M, tile_m, 8)      # sublane-aligned row tile
    tn, N_pad = _pick_tile(N, tile_n, 128)    # lane-dense column tile
    # Shrink tiles until the double-buffered footprint fits the VMEM budget
    # (48 MiB default: conservative for v7x's 64 MiB physical VMEM).
    while _footprint_bytes(tm, tn, D) > vmem_budget_bytes:
        if tm > 128:
            tm = max(128, 128 * ((tm // 2) // 128))
            M_pad = _round_up(M, tm)
        elif tn > 128:
            tn = max(128, 128 * ((tn // 2) // 128))
            N_pad = _round_up(N, tn)
        else:
            break  # TODO(synk): D-reduction grid axis for very large D

    if M_pad != M:
        src_f = jnp.pad(src_f, ((0, 0), (0, M_pad - M), (0, 0)))
        inv_denom = jnp.pad(inv_denom, ((0, 0), (0, M_pad - M), (0, 0)))
    if N_pad != N:
        tgt_f = jnp.pad(tgt_f, ((0, 0), (0, N_pad - N), (0, 0)))

    grid = (B, M_pad // tm, N_pad // tn)

    # 3-deep buffering on the fast-cycling tgt block only when D is small,
    # there is more than one column step, and the extra buffer fits the budget.
    tgt_tile_bytes = tn * _round_up(D, 128) * 4
    triple = (
        grid[2] > 1
        and tgt_tile_bytes <= (2 << 20)
        and _footprint_bytes(tm, tn, D, extra_tgt_bufs=1) <= vmem_budget_bytes
    )

    fp = _footprint_bytes(tm, tn, D, extra_tgt_bufs=1 if triple else 0)
    vmem_limit = int(min(56 << 20, max(16 << 20, fp + (8 << 20))))

    out = pl.pallas_call(
        _cosine_kernel,
        out_shape=jax.ShapeDtypeStruct((B, M_pad, N_pad), jnp.float32),
        grid_spec=pltpu.PrefetchScalarGridSpec(
            num_scalar_prefetch=0,
            grid=grid,
            in_specs=[
                pl.BlockSpec((1, tm, D), lambda b, i, j: (b, i, 0)),  # src rows i
                _tgt_spec(tn, D, triple),                             # tgt rows j
                pl.BlockSpec((1, tm, 1), lambda b, i, j: (b, i, 0)),  # inv denom i
            ],
            out_specs=pl.BlockSpec((1, tm, tn), lambda b, i, j: (b, i, j)),
        ),
        compiler_params=pltpu.CompilerParams(
            dimension_semantics=("parallel", "parallel", "parallel"),
            vmem_limit_bytes=vmem_limit,
        ),
    )(src_f, tgt_f, inv_denom)

    out = out[:, :M, :N]
    # torch .squeeze(): drop all size-1 dims.
    return jnp.squeeze(out)


def _reference(src, tgt):
    src = src.astype(jnp.float32)
    tgt = tgt.astype(jnp.float32)
    scores = jnp.einsum("bmd,bnd->bmn", src, tgt)
    sn = jnp.linalg.norm(src, axis=-1, keepdims=True)   # [B, M, 1]
    tn = jnp.linalg.norm(tgt, axis=-1, keepdims=True)   # [B, N, 1]
    return jnp.squeeze(scores / (sn * tn + 1e-9))


if __name__ == "__main__":
    key = jax.random.PRNGKey(0)
    k1, k2 = jax.random.split(key)
    B, M, D = 2, 8, 32
    src = jax.random.normal(k1, (B, M, D), dtype=jnp.float32)
    tgt = jax.random.normal(k2, (B, M, D), dtype=jnp.float32)

    out = cosine(src, tgt)
    jax.block_until_ready(out)

    ref = _reference(src, tgt)
    assert out.shape == ref.shape, (out.shape, ref.shape)
    assert jnp.allclose(out, ref, atol=1e-5, rtol=1e-5), "mismatch vs reference"

    print("KERNEL_OK")
</pallas_src>

<mosaic_0001>
module attributes {stable_mosaic.version = 11 : i64} {
  func.func @_cosine_kernel(%arg0: i32, %arg1: i32, %arg2: i32, %arg3: memref<1x8x32xf32, #tpu.memory_space<vmem>>, %arg4: memref<1x128x32xf32, #tpu.memory_space<vmem>>, %arg5: memref<1x8x1xf32, #tpu.memory_space<vmem>>, %arg6: memref<1x8x128xf32, #tpu.memory_space<vmem>>) attributes {dimension_semantics = [#tpu.dimension_semantics<parallel>, #tpu.dimension_semantics<parallel>, #tpu.dimension_semantics<parallel>], iteration_bounds = array<i64: 2, 1, 1>, scalar_prefetch = 0 : i64, scratch_operands = 0 : i64, tpu.core_type = #tpu.core_type<tc>, window_params = [{transform_indices = @transform_0, window_bounds = array<i64: 1, 8, 32>}, {transform_indices = @transform_1, window_bounds = array<i64: 1, 128, 32>}, {transform_indices = @transform_2, window_bounds = array<i64: 1, 8, 1>}, {transform_indices = @transform_3, window_bounds = array<i64: 1, 8, 128>}]} {
    %c0 = arith.constant 0 : index
    %c0_0 = arith.constant 0 : index
    %c0_1 = arith.constant 0 : index
    %0 = vector.load %arg3[%c0, %c0_0, %c0_1] : memref<1x8x32xf32, #tpu.memory_space<vmem>>, vector<1x8x32xf32>
    %1 = vector.shape_cast %0 : vector<1x8x32xf32> to vector<8x32xf32>
    %c0_2 = arith.constant 0 : index
    %c0_3 = arith.constant 0 : index
    %c0_4 = arith.constant 0 : index
    %2 = vector.load %arg4[%c0_2, %c0_3, %c0_4] : memref<1x128x32xf32, #tpu.memory_space<vmem>>, vector<1x128x32xf32>
    %3 = vector.shape_cast %2 : vector<1x128x32xf32> to vector<128x32xf32>
    %cst = arith.constant dense<0.000000e+00> : vector<8x128xf32>
    %4 = tpu.matmul %1, %3, %cst {dimension_numbers = #tpu.dot_dimension_numbers<[1], [1], [0], [0], [0, 0, 1, 0], [], []>} : vector<8x32xf32>, vector<128x32xf32>, vector<8x128xf32> -> vector<8x128xf32>
    %c0_5 = arith.constant 0 : index
    %c0_6 = arith.constant 0 : index
    %c0_7 = arith.constant 0 : index
    %5 = vector.load %arg5[%c0_5, %c0_6, %c0_7] : memref<1x8x1xf32, #tpu.memory_space<vmem>>, vector<1x8x1xf32>
    %6 = vector.shape_cast %5 : vector<1x8x1xf32> to vector<8x1xf32>
    %7 = vector.broadcast %6 : vector<8x1xf32> to vector<8x128xf32>
    %8 = arith.mulf %4, %7 : vector<8x128xf32>
    %c0_8 = arith.constant 0 : index
    %c0_9 = arith.constant 0 : index
    %c0_10 = arith.constant 0 : index
    %9 = vector.load %arg6[%c0_8, %c0_9, %c0_10] : memref<1x8x128xf32, #tpu.memory_space<vmem>>, vector<1x8x128xf32>
    %10 = vector.shape_cast %9 : vector<1x8x128xf32> to vector<8x128xf32>
    %11 = vector.shape_cast %8 : vector<8x128xf32> to vector<1x8x128xf32>
    tpu.vector_store %arg6[%c0_8, %c0_9, %c0_10], %11 {strides = array<i32>} : memref<1x8x128xf32, #tpu.memory_space<vmem>>, vector<1x8x128xf32>,
    return
  }
  func.func @transform_0(%arg0: i32, %arg1: i32, %arg2: i32) -> (i32, i32, i32) {
    %c0_i32 = arith.constant 0 : i32
    %c0_i32_0 = arith.constant 0 : i32
    return %arg0, %arg1, %c0_i32 : i32, i32, i32
  }
  func.func @transform_1(%arg0: i32, %arg1: i32, %arg2: i32) -> (i32, i32, i32) {
    %c0_i32 = arith.constant 0 : i32
    %c0_i32_0 = arith.constant 0 : i32
    return %arg0, %arg2, %c0_i32 : i32, i32, i32
  }
  func.func @transform_2(%arg0: i32, %arg1: i32, %arg2: i32) -> (i32, i32, i32) {
    %c0_i32 = arith.constant 0 : i32
    %c0_i32_0 = arith.constant 0 : i32
    return %arg0, %arg1, %c0_i32 : i32, i32, i32
  }
  func.func @transform_3(%arg0: i32, %arg1: i32, %arg2: i32) -> (i32, i32, i32) {
    %c0_i32 = arith.constant 0 : i32
    return %arg0, %arg1, %arg2 : i32, i32, i32
  }
}

</mosaic_0001>

<llo_original>
// kernel: tpu_custom_call.1
$region0: #{tpu_custom_call.1}
  #allocation0 [shape = 'u32[]', space=smem, size = 0x4, offset = 0x4, fixed_abs, tag = 'smem constant byte address 0x4 - core index']
  #allocation1 [shape = 'u32[144,128]{1,0:T(1,128)}', space=vmem, size = 0x12000, scoped, tag = 'internal scratch']
  %s0 = inlined_call_operand.vmem [shape: f32[2,8,32], index: 0, kind: input, shape index: {}]
  %s1 = inlined_call_operand.vmem [shape: f32[2,128,32], index: 1, kind: input, shape index: {}]
  %s2 = inlined_call_operand.vmem [shape: f32[2,8,1], index: 2, kind: input, shape index: {}]
  %s3 = inlined_call_operand.hbm [shape: f32[2,8,128], index: 3, kind: output, shape index: {}]
  %s4 = sld [smem:[#allocation0]]
  $region45: #{tpu_custom_call.1} parent=0
    _
  %s6 = ssub.s32 1, %s4
  %s7 = scalar_select 0, %s6, %s4
  $region1: #{tpu_custom_call.1} parent=0
    #allocation2 [shape = 'u8[8192]{0}', space=vmem, size = 0x2000, scoped, tag = 'output window, operand 0']
    #allocation3 [shape = 's32[2]{0}', space=sflag, size = 0x8, scoped, tag = 'scoped memory for tpu_custom_call.1']
    %8 = vsyncpa [#allocation3], 0
    %s9 = scalar_lea.sflag [#allocation3], 1
    %10 = vsyncpa %s9, 0
    loop: start=0, step=1, limit=4
    $region2: #{tpu_custom_call.1} parent=1 // loop_pre_header
      _
    $region3: #{tpu_custom_call.1} parent=1 // loop_header
      %s12 = sphi 0, %s16
      %p13 = scmp.ge.s32.totalorder %s12, 4
      %s19 = sphi 0, %s38
      %s20 = sphi 0, %s34
      %s21 = sphi 0, %s30
      %s22 = sphi 0, %s19
      %s23 = sphi 0, %s20
      %s24 = sphi 0, %s21
      %s25 = sphi 0, %s22
      %s26 = sphi 0, %s23
      %s27 = sphi 0, %s24
      %s43 = sphi 0, %s45
      %s46 = sphi 0, %s43
      %s47 = sphi 0, %s46
      %s63 = sphi 0, %s47
      %s71 = sphi 0, %s73
      %s74 = sphi 0, %s71
      %s75 = sphi 0, %s74
      %s91 = sphi 0, %s75
      %s99 = sphi 0, %s101
      %s102 = sphi 0, %s99
      %s103 = sphi 0, %s102
      %s119 = sphi 0, %s103
      %s129 = sphi 0, %s131
      %s132 = sphi 0, %s129
      %s133 = sphi 0, %s132
      %s149 = sphi 0, %s133
    $region4: #{tpu_custom_call.1} parent=1 // loop_header_branch
      %15 = sbr.rel (%p13) target = $region8
    $region5: #{tpu_custom_call.1} parent=1 // loop_body
      %s17 = ssub.s32 %s12, 1
      %s18 = ssub.s32 %s12, 2
      %s28 = sadd.s32 1, %s21
      %p29 = scmp.ge.s32.totalorder %s28, 1
      %s30 = scalar_select %p29, 0, %s28
      %s31 = sadd.s32 1, %s20
      %s32 = scalar_select %p29, %s31, %s20
      %p33 = scmp.ge.s32.totalorder %s32, 1
      %s34 = scalar_select %p33, 0, %s32
      %s35 = sadd.s32 1, %s19
      %s36 = scalar_select %p33, %s35, %s19
      %p37 = scmp.ge.s32.totalorder %s36, 2
      %s38 = scalar_select %p37, 0, %s36
      %s39 = ssub.s32 %s19, %s38
      %s40 = ssub.s32 %s20, %s34
      %s41 = sor.u32 %s39, %s40
      %p42 = scmp.eq.s32.totalorder %s41, 0
      %s44 = sadd.s32 %s43, 1
      %s45 = scalar_select %p42, %s43, %s44
      %p48 = pneg %p42
      %p49 = scmp.eq.s32.totalorder %s12, 1
      %p50 = por %p48, %p49
      %p51 = scmp.ne.s32.totalorder %s43, %s46
      %p52 = scmp.eq.s32.totalorder %s12, 0
      %p53 = por %p51, %p52
      %p54 = scmp.ne.s32.totalorder %s43, %s46
      %p55 = scmp.eq.s32.totalorder %s17, 1
      %p56 = por %p54, %p55
      %p57 = scmp.ne.s32.totalorder %s46, %s47
      %p58 = scmp.eq.s32.totalorder %s17, 0
      %p59 = por %p57, %p58
      %p60 = scmp.ne.s32.totalorder %s46, %s47
      %p61 = scmp.eq.s32.totalorder %s18, 1
      %p62 = por %p60, %p61
      %p64 = scmp.ne.s32.totalorder %s47, %s63
      %p65 = scmp.eq.s32.totalorder %s18, 0
      %p66 = por %p64, %p65
      %s67 = ssub.s32 %s19, %s38
      %s68 = ssub.s32 %s21, %s30
      %s69 = sor.u32 %s67, %s68
      %p70 = scmp.eq.s32.totalorder %s69, 0
      %s72 = sadd.s32 %s71, 1
      %s73 = scalar_select %p70, %s71, %s72
      %p76 = pneg %p70
      %p77 = scmp.eq.s32.totalorder %s12, 1
      %p78 = por %p76, %p77
      %p79 = scmp.ne.s32.totalorder %s71, %s74
      %p80 = scmp.eq.s32.totalorder %s12, 0
      %p81 = por %p79, %p80
      %p82 = scmp.ne.s32.totalorder %s71, %s74
      %p83 = scmp.eq.s32.totalorder %s17, 1
      %p84 = por %p82, %p83
      %p85 = scmp.ne.s32.totalorder %s74, %s75
      %p86 = scmp.eq.s32.totalorder %s17, 0
      %p87 = por %p85, %p86
      %p88 = scmp.ne.s32.totalorder %s74, %s75
      %p89 = scmp.eq.s32.totalorder %s18, 1
      %p90 = por %p88, %p89
      %p92 = scmp.ne.s32.totalorder %s75, %s91
      %p93 = scmp.eq.s32.totalorder %s18, 0
      %p94 = por %p92, %p93
      %s95 = ssub.s32 %s19, %s38
      %s96 = ssub.s32 %s20, %s34
      %s97 = sor.u32 %s95, %s96
      %p98 = scmp.eq.s32.totalorder %s97, 0
      %s100 = sadd.s32 %s99, 1
      %s101 = scalar_select %p98, %s99, %s100
      %p104 = pneg %p98
      %p105 = scmp.eq.s32.totalorder %s12, 1
      %p106 = por %p104, %p105
      %p107 = scmp.ne.s32.totalorder %s99, %s102
      %p108 = scmp.eq.s32.totalorder %s12, 0
      %p109 = por %p107, %p108
      %p110 = scmp.ne.s32.totalorder %s99, %s102
      %p111 = scmp.eq.s32.totalorder %s17, 1
      %p112 = por %p110, %p111
      %p113 = scmp.ne.s32.totalorder %s102, %s103
      %p114 = scmp.eq.s32.totalorder %s17, 0
      %p115 = por %p113, %p114
      %p116 = scmp.ne.s32.totalorder %s102, %s103
      %p117 = scmp.eq.s32.totalorder %s18, 1
      %p118 = por %p116, %p117
      %p120 = scmp.ne.s32.totalorder %s103, %s119
      %p121 = scmp.eq.s32.totalorder %s18, 0
      %p122 = por %p120, %p121
      %s123 = ssub.s32 %s19, %s38
      %s124 = ssub.s32 %s20, %s34
      %s125 = sor.u32 %s123, %s124
      %s126 = ssub.s32 %s21, %s30
      %s127 = sor.u32 %s125, %s126
      %p128 = scmp.eq.s32.totalorder %s127, 0
      %s130 = sadd.s32 %s129, 1
      %s131 = scalar_select %p128, %s129, %s130
      %p134 = pneg %p128
      %p135 = scmp.eq.s32.totalorder %s12, 1
      %p136 = por %p134, %p135
      %p137 = scmp.ne.s32.totalorder %s129, %s132
      %p138 = scmp.eq.s32.totalorder %s12, 0
      %p139 = por %p137, %p138
      %p140 = scmp.ne.s32.totalorder %s129, %s132
      %p141 = scmp.eq.s32.totalorder %s17, 1
      %p142 = por %p140, %p141
      %p143 = scmp.ne.s32.totalorder %s132, %s133
      %p144 = scmp.eq.s32.totalorder %s17, 0
      %p145 = por %p143, %p144
      %p146 = scmp.ne.s32.totalorder %s132, %s133
      %p147 = scmp.eq.s32.totalorder %s18, 1
      %p148 = por %p146, %p147
      %p150 = scmp.ne.s32.totalorder %s133, %s149
      %p151 = scmp.eq.s32.totalorder %s18, 0
      %p152 = por %p150, %p151
      %p153 = scmp.le.s32.totalorder 1, %s12
      %p154 = scmp.lt.s32.totalorder %s12, 3
      %p155 = pnand %p153, %p154
      %p156 = pneg %p155
      // Predicated region
      $region9: #{tpu_custom_call.1} parent=5 // pred_check
        _
      $region10: #{tpu_custom_call.1} parent=5 // pred_check_branch
        %158 = sbr.rel (%p155) target = $region12
      $region11: #{tpu_custom_call.1} parent=5 // pred_region
        %s159 = ssub.s32 %s12, 1
      $region12: #{tpu_custom_call.1} parent=5 // pred_fallthru
        _
      %p160 = scmp.lt.s32.totalorder %s12, 2
      // Predicated region
      $region13: #{tpu_custom_call.1} parent=5 // pred_check
        %p161 = pneg %p160
      $region14: #{tpu_custom_call.1} parent=5 // pred_check_branch
        %163 = sbr.rel (%p161) target = $region16
      $region15: #{tpu_custom_call.1} parent=5 // pred_region
        // Predicated region
        $region17: #{tpu_custom_call.1} parent=15 // pred_check
          %p164 = pneg %p53
        $region18: #{tpu_custom_call.1} parent=15 // pred_check_branch
          %166 = sbr.rel (%p164) target = $region20
        $region19: #{tpu_custom_call.1} parent=15 // pred_region
          %p167 = scmp.lt.s32.totalorder %s19, 1
          %s168 = scalar_select %p167, %s19, 1
          %p169 = scmp.lt.s32.totalorder %s20, 0
          %s170 = scalar_select %p169, %s20, 0
          %s171 = sadd.s32 %s170, %s168
          %s172 = smul.addr %s171, 8
          %s173 = scalar_lea.vmem %s0, %s172
        $region20: #{tpu_custom_call.1} parent=15 // pred_fallthru
          _
        // Predicated region
        $region21: #{tpu_custom_call.1} parent=15 // pred_check
          %p174 = pneg %p81
        $region22: #{tpu_custom_call.1} parent=15 // pred_check_branch
          %176 = sbr.rel (%p174) target = $region24
        $region23: #{tpu_custom_call.1} parent=15 // pred_region
          %s177 = smul.u32 16, %s21
          %p178 = scmp.lt.s32.totalorder %s19, 1
          %s179 = scalar_select %p178, %s19, 1
          %p180 = scmp.lt.s32.totalorder %s177, 15
          %s181 = scalar_select %p180, %s177, 15
          %s182 = smul.addr %s179, 16
          %s183 = sadd.s32 %s181, %s182
          %s184 = smul.addr %s183, 8
          %s185 = scalar_lea.vmem %s1, %s184
          %s186 = smul.u32 16, %s21
        $region24: #{tpu_custom_call.1} parent=15 // pred_fallthru
          _
        // Predicated region
        $region25: #{tpu_custom_call.1} parent=15 // pred_check
          %p187 = pneg %p109
        $region26: #{tpu_custom_call.1} parent=15 // pred_check_branch
          %189 = sbr.rel (%p187) target = $region28
        $region27: #{tpu_custom_call.1} parent=15 // pred_region
          %p190 = scmp.lt.s32.totalorder %s19, 1
          %s191 = scalar_select %p190, %s19, 1
          %p192 = scmp.lt.s32.totalorder %s20, 0
          %s193 = scalar_select %p192, %s20, 0
          %s194 = sadd.s32 %s193, %s191
          %s195 = smul.addr %s194, 8
          %s196 = scalar_lea.vmem %s2, %s195
        $region28: #{tpu_custom_call.1} parent=15 // pred_fallthru
          _
      $region16: #{tpu_custom_call.1} parent=5 // pred_fallthru
        _
      %p197 = scmp.le.s32.totalorder 1, %s12
      %p198 = scmp.lt.s32.totalorder %s12, 3
      %p199 = pnand %p197, %p198
      %p200 = pneg %p199
      // Predicated region
      $region29: #{tpu_custom_call.1} parent=5 // pred_check
        _
      $region30: #{tpu_custom_call.1} parent=5 // pred_check_branch
        %202 = sbr.rel (%p199) target = $region32
      $region31: #{tpu_custom_call.1} parent=5 // pred_region
        %s203 = ssub.s32 %s12, 1
        %p204 = scmp.lt.s32.totalorder %s22, 1
        %s205 = scalar_select %p204, %s22, 1
        %p206 = scmp.lt.s32.totalorder %s23, 0
        %s207 = scalar_select %p206, %s23, 0
        %s208 = sadd.s32 %s207, %s205
        %s209 = smul.addr %s208, 8
        %s210 = scalar_lea.vmem %s0, %s209
        %p211 = pneg %p59
        %p212 = pneg %p56
        %s213 = smul.u32 16, %s24
        %p214 = scmp.lt.s32.totalorder %s22, 1
        %s215 = scalar_select %p214, %s22, 1
        %p216 = scmp.lt.s32.totalorder %s213, 15
        %s217 = scalar_select %p216, %s213, 15
        %s218 = smul.addr %s215, 16
        %s219 = sadd.s32 %s217, %s218
        %s220 = smul.addr %s219, 8
        %s221 = scalar_lea.vmem %s1, %s220
        %p222 = pneg %p87
        %p223 = pneg %p84
        %p224 = scmp.lt.s32.totalorder %s22, 1
        %s225 = scalar_select %p224, %s22, 1
        %p226 = scmp.lt.s32.totalorder %s23, 0
        %s227 = scalar_select %p226, %s23, 0
        %s228 = sadd.s32 %s227, %s225
        %s229 = smul.addr %s228, 8
        %s230 = scalar_lea.vmem %s2, %s229
        %p231 = pneg %p115
        %p232 = pneg %p112
        %p233 = pneg %p145
        %p234 = pneg %p142
        %s235 = sand.u32 %s132, 1
        %s236 = scalar_lea.sflag [#allocation3], %s235
        %s237 = sand.u32 %s132, 1
        %s238 = smul.addr %s237, 8
        %s239 = scalar_lea.vmem [#allocation2], %s238
        %p240 = scmp.lt.s32.totalorder %s22, 1
        %s241 = scalar_select %p240, %s22, 1
        %p242 = scmp.lt.s32.totalorder %s23, 0
        %s243 = scalar_select %p242, %s23, 0
        %s244 = sadd.s32 %s243, %s241
        %s245 = smul.addr %s244, 8
        %s246 = scalar_lea.vmem %s0, %s245
        %s247 = smul.u32 16, %s24
        %p248 = scmp.lt.s32.totalorder %s22, 1
        %s249 = scalar_select %p248, %s22, 1
        %p250 = scmp.lt.s32.totalorder %s247, 15
        %s251 = scalar_select %p250, %s247, 15
        %s252 = smul.addr %s249, 16
        %s253 = sadd.s32 %s251, %s252
        %s254 = smul.addr %s253, 8
        %s255 = scalar_lea.vmem %s1, %s254
        %s256 = smul.u32 16, %s24
        %p257 = scmp.lt.s32.totalorder %s22, 1
        %s258 = scalar_select %p257, %s22, 1
        %p259 = scmp.lt.s32.totalorder %s23, 0
        %s260 = scalar_select %p259, %s23, 0
        %s261 = sadd.s32 %s260, %s258
        %s262 = smul.addr %s261, 8
        %s263 = scalar_lea.vmem %s2, %s262
        %v264 = vld [vmem:[%s246] sm:$0xff]
        %v265 = vld [vmem:[%s255] sm:$0xff]
        %v266 = vld [vmem:[%s255 + $0x8] sm:$0xff]
        %v267 = vld [vmem:[%s255 + $0x10] sm:$0xff]
        %v268 = vld [vmem:[%s255 + $0x18] sm:$0xff]
        %v269 = vld [vmem:[%s255 + $0x20] sm:$0xff]
        %v270 = vld [vmem:[%s255 + $0x28] sm:$0xff]
        %v271 = vld [vmem:[%s255 + $0x30] sm:$0xff]
        %v272 = vld [vmem:[%s255 + $0x38] sm:$0xff]
        %v273 = vld [vmem:[%s255 + $0x40] sm:$0xff]
        %v274 = vld [vmem:[%s255 + $0x48] sm:$0xff]
        %v275 = vld [vmem:[%s255 + $0x50] sm:$0xff]
        %v276 = vld [vmem:[%s255 + $0x58] sm:$0xff]
        %v277 = vld [vmem:[%s255 + $0x60] sm:$0xff]
        %v278 = vld [vmem:[%s255 + $0x68] sm:$0xff]
        %v279 = vld [vmem:[%s255 + $0x70] sm:$0xff]
        %v280 = vld [vmem:[%s255 + $0x78] sm:$0xff]
        %vm281 = vcmask 261120
        %v283 = vsel %vm281, %v264, 0
        %v286 = vsel %vm281, %v265, 0
        %v289 = vsel %vm281, %v266, 0
        %v292 = vsel %vm281, %v267, 0
        %v295 = vsel %vm281, %v268, 0
        %v298 = vsel %vm281, %v269, 0
        %v301 = vsel %vm281, %v270, 0
        %v304 = vsel %vm281, %v271, 0
        %v307 = vsel %vm281, %v272, 0
        %v310 = vsel %vm281, %v273, 0
        %v313 = vsel %vm281, %v274, 0
        %v316 = vsel %vm281, %v275, 0
        %v319 = vsel %vm281, %v276, 0
        %v322 = vsel %vm281, %v277, 0
        %v325 = vsel %vm281, %v278, 0
        %v328 = vsel %vm281, %v279, 0
        %v331 = vsel %vm281, %v280, 0
        %333 = vmatprep.subr.mxu0 0.0
        %334 = vmatpush1.xpose.msra.mxu0 %v331
        %335 = vmatprep.subr.mxu0 0.0
        %336 = vmatpush1.xpose.msra.mxu0 %v328
        %337 = vmatprep.subr.mxu0 0.0
        %338 = vmatpush1.xpose.msra.mxu0 %v325
        %339 = vmatprep.subr.mxu0 0.0
        %340 = vmatpush1.xpose.msra.mxu0 %v322
        %341 = vmatprep.subr.mxu0 0.0
        %342 = vmatpush1.xpose.msra.mxu0 %v319
        %343 = vmatprep.subr.mxu0 0.0
        %344 = vmatpush1.xpose.msra.mxu0 %v316
        %345 = vmatprep.subr.mxu0 0.0
        %346 = vmatpush1.xpose.msra.mxu0 %v313
        %347 = vmatprep.subr.mxu0 0.0
        %348 = vmatpush1.xpose.msra.mxu0 %v310
        %349 = vmatprep.subr.mxu0 0.0
        %350 = vmatpush1.xpose.msra.mxu0 %v307
        %351 = vmatprep.subr.mxu0 0.0
        %352 = vmatpush1.xpose.msra.mxu0 %v304
        %353 = vmatprep.subr.mxu0 0.0
        %354 = vmatpush1.xpose.msra.mxu0 %v301
        %355 = vmatprep.subr.mxu0 0.0
        %356 = vmatpush1.xpose.msra.mxu0 %v298
        %357 = vmatprep.subr.mxu0 0.0
        %358 = vmatpush1.xpose.msra.mxu0 %v295
        %359 = vmatprep.subr.mxu0 0.0
        %360 = vmatpush1.xpose.msra.mxu0 %v292
        %361 = vmatprep.subr.mxu0 0.0
        %362 = vmatpush1.xpose.msra.mxu0 %v289
        %363 = vmatprep.subr.mxu0 0.0
        %364 = vmatpush1.xpose.msra.mxu0 %v286
        %365 = vmatprep.subr.mxu0 0.0
        %366 = vmatpush2.xpose.msra.mxu0 0.0
        %367 = vmatprep.subr.mxu0 0.0
        %368 = vmatpush2.xpose.msra.mxu0 0.0
        %369 = vmatprep.subr.mxu0 0.0
        %370 = vmatpush2.xpose.msra.mxu0 0.0
        %371 = vmatprep.subr.mxu0 0.0
        %372 = vmatpush2.xpose.msra.mxu0 0.0
        %373 = vmatprep.subr.mxu0 0.0
        %374 = vmatpush2.xpose.msra.mxu0 0.0
        %375 = vmatprep.subr.mxu0 0.0
        %376 = vmatpush2.xpose.msra.mxu0 0.0
        %377 = vmatprep.subr.mxu0 0.0
        %378 = vmatpush2.xpose.msra.mxu0 0.0
        %379 = vmatprep.subr.mxu0 0.0
        %380 = vmatpush2.xpose.msra.mxu0 0.0
        %381 = vmatprep.subr.mxu0 0.0
        %382 = vmatpush2.xpose.msra.mxu0 0.0
        %383 = vmatprep.subr.mxu0 0.0
        %384 = vmatpush2.xpose.msra.mxu0 0.0
        %385 = vmatprep.subr.mxu0 0.0
        %386 = vmatpush2.xpose.msra.mxu0 0.0
        %387 = vmatprep.subr.mxu0 0.0
        %388 = vmatpush2.xpose.msra.mxu0 0.0
        %389 = vmatprep.subr.mxu0 0.0
        %390 = vmatpush2.xpose.msra.mxu0 0.0
        %391 = vmatprep.subr.mxu0 0.0
        %392 = vmatpush2.xpose.msra.mxu0 0.0
        %393 = vmatprep.subr.mxu0 0.0
        %394 = vmatpush2.xpose.msra.mxu0 0.0
        %395 = vmatprep.subr.mxu0 0.0
        %396 = vmatpush2.xpose.msra.mxu0 0.0
        %397 = vmatprep.mubr.f32.mxu0 0.0
        %398 = vmatmul.mubr.f32.gmra.mxu0 %v283
        %v399 = vpop.f32.mrf.mxu0
        %v400 = vadd.f32 0.0, %v399
        %v401 = vpop.f32.mrf.mxu0
        %402 = vdwg.mxu0
        %v403 = vld [vmem:[%s263] sm:$0xff]
        %405 = vset.pattern.permute.xlu0 0
        %406 = vperm.xlu0 %405, %v403
        %v407 = vpop.permute.xlu0 %406
        %v409 = vmul.f32 %v400, %v407
        %410 = vst [vmem:[%s239] sm:$0xff] %v409
        %s411 = sand.u32 %s132, 1
        %s412 = scalar_lea.sflag [#allocation3], %s411
        %s413 = sand.u32 %s132, 1
        %s414 = smul.addr %s413, 8
        %s415 = scalar_lea.vmem [#allocation2], %s414
        // Predicated region
        $region33: #{tpu_custom_call.1} parent=31 // pred_check
          %p416 = pneg %p142
        $region34: #{tpu_custom_call.1} parent=31 // pred_check_branch
          %418 = sbr.rel (%p416) target = $region36
        $region35: #{tpu_custom_call.1} parent=31 // pred_region
          %s420 = ssub.s32 128, 128
          %421 = vsyncadd %s412, %s420
          %s422 = sadd.s32 %s24, %s23
          %s423 = sadd.s32 %s422, %s22
          %s424 = smul.addr %s423, 128
          %s425 = scalar_lea.hbm %s3, %s424
          %s427 = sshll.u32 %s415, 4
          %s428 = int_to_ptr.vmem [resolvable:$true] %s427
          %430 = dma.vmem_to_hbm [thread:$0]  %s428, 128, %s425, %s412
        $region36: #{tpu_custom_call.1} parent=31 // pred_fallthru
          _
      $region32: #{tpu_custom_call.1} parent=5 // pred_fallthru
        _
      %p431 = scmp.le.s32.totalorder 2, %s12
      // Predicated region
      $region37: #{tpu_custom_call.1} parent=5 // pred_check
        %p432 = pneg %p431
      $region38: #{tpu_custom_call.1} parent=5 // pred_check_branch
        %434 = sbr.rel (%p432) target = $region40
      $region39: #{tpu_custom_call.1} parent=5 // pred_region
        %s435 = ssub.s32 %s12, 2
        // Predicated region
        $region41: #{tpu_custom_call.1} parent=39 // pred_check
          %p436 = pneg %p148
        $region42: #{tpu_custom_call.1} parent=39 // pred_check_branch
          %438 = sbr.rel (%p436) target = $region44
        $region43: #{tpu_custom_call.1} parent=39 // pred_region
          %s439 = sand.u32 %s133, 1
          %s440 = scalar_lea.sflag [#allocation3], %s439
          %s441 = sand.u32 %s133, 1
          %s442 = smul.addr %s441, 8
          %s443 = scalar_lea.vmem [#allocation2], %s442
          %444 = dma.done %s440, 128
        $region44: #{tpu_custom_call.1} parent=39 // pred_fallthru
          _
      $region40: #{tpu_custom_call.1} parent=5 // pred_fallthru
        _
    $region6: #{tpu_custom_call.1} parent=1 // loop_footer
      %s16 = sadd.s32 1, %s12
    $region7: #{tpu_custom_call.1} parent=1 // loop_footer_branch
      %11 = sbr.rel target = $region3
    $region8: #{tpu_custom_call.1} parent=1 // loop_exit
      _
    %445 = vsyncpa [#allocation3], 1
    %s446 = scalar_lea.sflag [#allocation3], 1
    %447 = vsyncpa %s446, 1

</llo_original>
